<compile_context>
chip_gen: v5e
topology: v5e:2x2
jax: 0.10.0
libtpu: 0.0.40
codegen_flags: <defaults>
</compile_context>

<pallas_src>
import functools

import jax
import jax.numpy as jnp
from jax.experimental import pallas as pl
from jax.experimental.pallas import tpu as pltpu

_LANE = 128


def _xent_kernel(pred_ref, lbl_ref, loss_ref, wsum_ref, *, weights, hw, needs_mask):
    """Weighted cross-entropy partial sums for one (sample, pixel-tile) step.

    pred_ref : (C, TS, 128)   float logits tile (batch dim squeezed)
    lbl_ref  : (TS, 128)      int32 labels tile
    loss_ref : (1, SUB, 128)  f32 resident accumulator: sum_p w[y_p]*nll_p
    wsum_ref : (1, SUB, 128)  f32 resident accumulator: sum_p w[y_p]
    """
    i = pl.program_id(1)
    C, TS, L = pred_ref.shape
    SUB = loss_ref.shape[1]

    @pl.when(i == 0)
    def _():
        loss_ref[...] = jnp.zeros_like(loss_ref)
        wsum_ref[...] = jnp.zeros_like(wsum_ref)

    lbl = lbl_ref[...]                                   # (TS, L) int32

    # Running max over classes (unrolled -> elementwise VPU ops on full vregs).
    m = pred_ref[0].astype(jnp.float32)
    for c in range(1, C):
        m = jnp.maximum(m, pred_ref[c].astype(jnp.float32))

    s = jnp.zeros_like(m)
    logit_y = jnp.zeros_like(m)
    w_y = jnp.zeros_like(m)
    for c in range(C):
        xc = pred_ref[c].astype(jnp.float32)
        s = s + jnp.exp(xc - m)                          # EUP
        sel = lbl == c
        logit_y = jnp.where(sel, xc, logit_y)
        w_y = jnp.where(sel, jnp.float32(weights[c]), w_y)

    nll = (m + jnp.log(s)) - logit_y                     # (TS, L)
    wl = w_y * nll

    if needs_mask:
        # Ragged tail: zero contributions from padded / out-of-bounds pixels.
        # Use where (not multiply) since OOB logits may be inf/NaN.
        row = jax.lax.broadcasted_iota(jnp.int32, (TS, L), 0)
        lane = jax.lax.broadcasted_iota(jnp.int32, (TS, L), 1)
        valid = (i * TS + row) * L + lane < hw
        wl = jnp.where(valid, wl, 0.0)
        w_y = jnp.where(valid, w_y, 0.0)

    def fold(x):
        # (TS, L) -> (SUB, L) with static aligned slices: pure vreg adds, no XLU.
        if TS == SUB:
            return x
        acc = x[0:SUB]
        for g in range(1, TS // SUB):
            acc = acc + x[g * SUB:(g + 1) * SUB]
        return acc

    loss_ref[0] += fold(wl)
    wsum_ref[0] += fold(w_y)


@functools.partial(jax.jit, static_argnames=("class_weights",))
def cross_entropy_loss(pred, lbl, class_weights=(1.0, 1.0)):
    """Matches CrossEntropyLoss.forward(pred, lbl).

    pred: (N, C, H, W) float logits (PyTorch NCHW convention)
    lbl : (N, H, W) or (N, 1, H, W) integer class labels
    returns: scalar float32 weighted-mean cross entropy
    """
    if lbl.ndim == 4 and lbl.shape[1] == 1:
        lbl = lbl[:, 0, :, :]

    N, C, H, W = pred.shape
    HW = H * W
    rows = -(-HW // _LANE)            # pixel-rows of 128 lanes
    HWp = rows * _LANE

    # Free reshapes; the pad is only taken when H*W is not a multiple of 128.
    pred_r = pred.reshape(N, C, HW)
    lbl_r = lbl.reshape(N, HW).astype(jnp.int32)
    if HWp != HW:
        pred_r = jnp.pad(pred_r, ((0, 0), (0, 0), (0, HWp - HW)))
        lbl_r = jnp.pad(lbl_r, ((0, 0), (0, HWp - HW)))
    pred_r = pred_r.reshape(N, C, rows, _LANE)
    lbl_r = lbl_r.reshape(N, rows, _LANE)

    # Pixel-row tile: target ~1 MiB of input (logits + labels) per grid step,
    # capped at 512 rows (64K pixels). Double-buffered tiles stay well under
    # the scoped-VMEM defaults on v5e (16 MiB) and v6e/v7x (32 MiB).
    row_bytes = (C + 1) * _LANE * 4
    TS = max(8, min(512, (1 << 20) // row_bytes))
    TS -= TS % 8
    if TS >= rows:
        TS = rows                     # single tile along the pixel-row axis
    SUB = 8 if TS % 8 == 0 else TS

    needs_mask = (HWp != HW) or (rows % TS != 0)
    n_tiles = -(-rows // TS)

    weights = tuple(float(w) for w in class_weights)
    assert len(weights) == C, "class_weights must have one entry per class"

    kernel = functools.partial(
        _xent_kernel, weights=weights, hw=HW, needs_mask=needs_mask)

    loss_p, wsum_p = pl.pallas_call(
        kernel,
        out_shape=(
            jax.ShapeDtypeStruct((N, SUB, _LANE), jnp.float32),
            jax.ShapeDtypeStruct((N, SUB, _LANE), jnp.float32),
        ),
        grid_spec=pltpu.PrefetchScalarGridSpec(
            num_scalar_prefetch=0,
            grid=(N, n_tiles),
            in_specs=[
                pl.BlockSpec((None, C, TS, _LANE), lambda n, i: (n, 0, i, 0)),
                pl.BlockSpec((None, TS, _LANE), lambda n, i: (n, i, 0)),
            ],
            out_specs=(
                pl.BlockSpec((1, SUB, _LANE), lambda n, i: (n, 0, 0)),
                pl.BlockSpec((1, SUB, _LANE), lambda n, i: (n, 0, 0)),
            ),
        ),
        compiler_params=pltpu.CompilerParams(
            dimension_semantics=("parallel", "arbitrary")),
    )(pred_r, lbl_r)

    return (jnp.sum(loss_p) / jnp.sum(wsum_p)).astype(jnp.float32)


def _reference(pred, lbl, class_weights=(1.0, 1.0)):
    """Pure-JAX reference of torch.nn.CrossEntropyLoss(weight)."""
    if lbl.ndim == 4 and lbl.shape[1] == 1:
        lbl = lbl[:, 0, :, :]
    w = jnp.asarray(class_weights, jnp.float32)
    logp = jax.nn.log_softmax(pred.astype(jnp.float32), axis=1)     # (N,C,H,W)
    nll = -jnp.take_along_axis(logp, lbl[:, None].astype(jnp.int32), axis=1)[:, 0]
    wy = w[lbl]
    return jnp.sum(wy * nll) / jnp.sum(wy)


if __name__ == "__main__":
    key = jax.random.PRNGKey(0)
    k1, k2 = jax.random.split(key)

    N, C, H, W = 2, 2, 16, 16
    class_weights = (1.0, 2.0)

    pred = jax.random.normal(k1, (N, C, H, W), dtype=jnp.float32)
    lbl = jax.random.randint(k2, (N, 1, H, W), 0, C, dtype=jnp.int32)

    out = cross_entropy_loss(pred, lbl, class_weights)
    jax.block_until_ready(out)

    ref = _reference(pred, lbl, class_weights)
    assert jnp.allclose(out, ref, rtol=1e-5, atol=1e-5), (out, ref)

    print("KERNEL_OK")
</pallas_src>

<mosaic_0001>
module attributes {stable_mosaic.version = 11 : i64} {
  func.func @_xent_kernel(%arg0: i32, %arg1: i32, %arg2: memref<1x2x2x128xf32, #tpu.memory_space<vmem>>, %arg3: memref<1x2x128xi32, #tpu.memory_space<vmem>>, %arg4: memref<1x2x128xf32, #tpu.memory_space<vmem>>, %arg5: memref<1x2x128xf32, #tpu.memory_space<vmem>>) attributes {dimension_semantics = [#tpu.dimension_semantics<parallel>, #tpu.dimension_semantics<arbitrary>], iteration_bounds = array<i64: 2, 1>, scalar_prefetch = 0 : i64, scratch_operands = 0 : i64, tpu.core_type = #tpu.core_type<tc>, window_params = [{transform_indices = @transform_0, window_bounds = array<i64: 1, 2, 2, 128>}, {transform_indices = @transform_1, window_bounds = array<i64: 1, 2, 128>}, {transform_indices = @transform_2, window_bounds = array<i64: 1, 2, 128>}, {transform_indices = @transform_3, window_bounds = array<i64: 1, 2, 128>}]} {
    %c0_i32 = arith.constant 0 : i32
    %0 = arith.cmpi eq, %arg1, %c0_i32 : i32
    %1 = arith.extui %0 : i1 to i32
    %c0_i32_0 = arith.constant 0 : i32
    %2 = arith.cmpi ne, %1, %c0_i32_0 : i32
    scf.if %2 {
      %cst_35 = arith.constant 0.000000e+00 : f32
      %49 = vector.broadcast %cst_35 : f32 to vector<1x2x128xf32>
      %c0_36 = arith.constant 0 : index
      %c0_37 = arith.constant 0 : index
      %c0_38 = arith.constant 0 : index
      %50 = vector.load %arg4[%c0_36, %c0_37, %c0_38] : memref<1x2x128xf32, #tpu.memory_space<vmem>>, vector<1x2x128xf32>
      tpu.vector_store %arg4[%c0_36, %c0_37, %c0_38], %49 {strides = array<i32>} : memref<1x2x128xf32, #tpu.memory_space<vmem>>, vector<1x2x128xf32>,
      %cst_39 = arith.constant 0.000000e+00 : f32
      %51 = vector.broadcast %cst_39 : f32 to vector<1x2x128xf32>
      %c0_40 = arith.constant 0 : index
      %c0_41 = arith.constant 0 : index
      %c0_42 = arith.constant 0 : index
      %52 = vector.load %arg5[%c0_40, %c0_41, %c0_42] : memref<1x2x128xf32, #tpu.memory_space<vmem>>, vector<1x2x128xf32>
      tpu.vector_store %arg5[%c0_40, %c0_41, %c0_42], %51 {strides = array<i32>} : memref<1x2x128xf32, #tpu.memory_space<vmem>>, vector<1x2x128xf32>,
    } else {
    }
    %c0 = arith.constant 0 : index
    %c0_1 = arith.constant 0 : index
    %c0_2 = arith.constant 0 : index
    %3 = vector.load %arg3[%c0, %c0_1, %c0_2] : memref<1x2x128xi32, #tpu.memory_space<vmem>>, vector<1x2x128xi32>
    %4 = vector.shape_cast %3 : vector<1x2x128xi32> to vector<2x128xi32>
    %c0_3 = arith.constant 0 : index
    %c0_4 = arith.constant 0 : index
    %c0_5 = arith.constant 0 : index
    %c0_6 = arith.constant 0 : index
    %5 = vector.load %arg2[%c0_3, %c0_4, %c0_5, %c0_6] : memref<1x2x2x128xf32, #tpu.memory_space<vmem>>, vector<1x1x2x128xf32>
    %6 = vector.shape_cast %5 : vector<1x1x2x128xf32> to vector<2x128xf32>
    %c0_7 = arith.constant 0 : index
    %c1 = arith.constant 1 : index
    %c0_8 = arith.constant 0 : index
    %c0_9 = arith.constant 0 : index
    %7 = vector.load %arg2[%c0_7, %c1, %c0_8, %c0_9] : memref<1x2x2x128xf32, #tpu.memory_space<vmem>>, vector<1x1x2x128xf32>
    %8 = vector.shape_cast %7 : vector<1x1x2x128xf32> to vector<2x128xf32>
    %9 = arith.maximumf %6, %8 : vector<2x128xf32>
    %cst = arith.constant 0.000000e+00 : f32
    %10 = vector.broadcast %cst : f32 to vector<2x128xf32>
    %cst_10 = arith.constant 0.000000e+00 : f32
    %11 = vector.broadcast %cst_10 : f32 to vector<2x128xf32>
    %cst_11 = arith.constant 0.000000e+00 : f32
    %12 = vector.broadcast %cst_11 : f32 to vector<2x128xf32>
    %c0_12 = arith.constant 0 : index
    %c0_13 = arith.constant 0 : index
    %c0_14 = arith.constant 0 : index
    %c0_15 = arith.constant 0 : index
    %13 = vector.load %arg2[%c0_12, %c0_13, %c0_14, %c0_15] : memref<1x2x2x128xf32, #tpu.memory_space<vmem>>, vector<1x1x2x128xf32>
    %14 = vector.shape_cast %13 : vector<1x1x2x128xf32> to vector<2x128xf32>
    %15 = arith.subf %14, %9 : vector<2x128xf32>
    %16 = math.exp %15 : vector<2x128xf32>
    %17 = arith.addf %10, %16 : vector<2x128xf32>
    %c0_i32_16 = arith.constant 0 : i32
    %18 = vector.broadcast %c0_i32_16 : i32 to vector<2x128xi32>
    %19 = arith.cmpi eq, %4, %18 : vector<2x128xi32>
    %20 = arith.select %19, %14, %11 : vector<2x128xi1>, vector<2x128xf32>
    %cst_17 = arith.constant 1.000000e+00 : f32
    %21 = vector.broadcast %cst_17 : f32 to vector<2x128xf32>
    %22 = arith.select %19, %21, %12 : vector<2x128xi1>, vector<2x128xf32>
    %c0_18 = arith.constant 0 : index
    %c1_19 = arith.constant 1 : index
    %c0_20 = arith.constant 0 : index
    %c0_21 = arith.constant 0 : index
    %23 = vector.load %arg2[%c0_18, %c1_19, %c0_20, %c0_21] : memref<1x2x2x128xf32, #tpu.memory_space<vmem>>, vector<1x1x2x128xf32>
    %24 = vector.shape_cast %23 : vector<1x1x2x128xf32> to vector<2x128xf32>
    %25 = arith.subf %24, %9 : vector<2x128xf32>
    %26 = math.exp %25 : vector<2x128xf32>
    %27 = arith.addf %17, %26 : vector<2x128xf32>
    %c1_i32 = arith.constant 1 : i32
    %28 = vector.broadcast %c1_i32 : i32 to vector<2x128xi32>
    %29 = arith.cmpi eq, %4, %28 : vector<2x128xi32>
    %30 = arith.select %29, %24, %20 : vector<2x128xi1>, vector<2x128xf32>
    %cst_22 = arith.constant 2.000000e+00 : f32
    %31 = vector.broadcast %cst_22 : f32 to vector<2x128xf32>
    %32 = arith.select %29, %31, %22 : vector<2x128xi1>, vector<2x128xf32>
    %33 = math.log %27 : vector<2x128xf32>
    %34 = arith.addf %9, %33 : vector<2x128xf32>
    %35 = arith.subf %34, %30 : vector<2x128xf32>
    %36 = arith.mulf %32, %35 : vector<2x128xf32>
    %c0_23 = arith.constant 0 : index
    %c0_24 = arith.constant 0 : index
    %c0_25 = arith.constant 0 : index
    %37 = vector.load %arg4[%c0_23, %c0_24, %c0_25] : memref<1x2x128xf32, #tpu.memory_space<vmem>>, vector<1x2x128xf32>
    %38 = vector.shape_cast %37 : vector<1x2x128xf32> to vector<2x128xf32>
    %39 = arith.addf %38, %36 : vector<2x128xf32>
    %c0_26 = arith.constant 0 : index
    %c0_27 = arith.constant 0 : index
    %c0_28 = arith.constant 0 : index
    %40 = vector.load %arg4[%c0_26, %c0_27, %c0_28] : memref<1x2x128xf32, #tpu.memory_space<vmem>>, vector<1x2x128xf32>
    %41 = vector.shape_cast %40 : vector<1x2x128xf32> to vector<2x128xf32>
    %42 = vector.shape_cast %39 : vector<2x128xf32> to vector<1x2x128xf32>
    tpu.vector_store %arg4[%c0_26, %c0_27, %c0_28], %42 {strides = array<i32>} : memref<1x2x128xf32, #tpu.memory_space<vmem>>, vector<1x2x128xf32>,
    %c0_29 = arith.constant 0 : index
    %c0_30 = arith.constant 0 : index
    %c0_31 = arith.constant 0 : index
    %43 = vector.load %arg5[%c0_29, %c0_30, %c0_31] : memref<1x2x128xf32, #tpu.memory_space<vmem>>, vector<1x2x128xf32>
    %44 = vector.shape_cast %43 : vector<1x2x128xf32> to vector<2x128xf32>
    %45 = arith.addf %44, %32 : vector<2x128xf32>
    %c0_32 = arith.constant 0 : index
    %c0_33 = arith.constant 0 : index
    %c0_34 = arith.constant 0 : index
    %46 = vector.load %arg5[%c0_32, %c0_33, %c0_34] : memref<1x2x128xf32, #tpu.memory_space<vmem>>, vector<1x2x128xf32>
    %47 = vector.shape_cast %46 : vector<1x2x128xf32> to vector<2x128xf32>
    %48 = vector.shape_cast %45 : vector<2x128xf32> to vector<1x2x128xf32>
    tpu.vector_store %arg5[%c0_32, %c0_33, %c0_34], %48 {strides = array<i32>} : memref<1x2x128xf32, #tpu.memory_space<vmem>>, vector<1x2x128xf32>,
    return
  }
  func.func @transform_0(%arg0: i32, %arg1: i32) -> (i32, i32, i32, i32) {
    %c0_i32 = arith.constant 0 : i32
    %c0_i32_0 = arith.constant 0 : i32
    %c0_i32_1 = arith.constant 0 : i32
    return %arg0, %c0_i32, %arg1, %c0_i32_0 : i32, i32, i32, i32
  }
  func.func @transform_1(%arg0: i32, %arg1: i32) -> (i32, i32, i32) {
    %c0_i32 = arith.constant 0 : i32
    %c0_i32_0 = arith.constant 0 : i32
    return %arg0, %arg1, %c0_i32 : i32, i32, i32
  }
  func.func @transform_2(%arg0: i32, %arg1: i32) -> (i32, i32, i32) {
    %c0_i32 = arith.constant 0 : i32
    %c0_i32_0 = arith.constant 0 : i32
    %c0_i32_1 = arith.constant 0 : i32
    return %arg0, %c0_i32, %c0_i32_0 : i32, i32, i32
  }
  func.func @transform_3(%arg0: i32, %arg1: i32) -> (i32, i32, i32) {
    %c0_i32 = arith.constant 0 : i32
    %c0_i32_0 = arith.constant 0 : i32
    %c0_i32_1 = arith.constant 0 : i32
    return %arg0, %c0_i32, %c0_i32_0 : i32, i32, i32
  }
}

</mosaic_0001>

<llo_original>
// kernel: squeeze.1
$region0: #{squeeze.1}
  %s0 = inlined_call_operand.hbm [shape: s32[2,1,16,16], index: 0, kind: input, shape index: {}]
  %s1 = inlined_call_operand.vmem [shape: s32[2,2,128], index: 1, kind: output, shape index: {}]
  $region1: #{squeeze.1} parent=0
    #allocation0 [shape = 'u8[16384]{0}', space=vmem, size = 0x4000, scoped, tag = 'operand span for operand 0']
    #allocation1 [shape = 's32[1]{0}', space=sflag, size = 0x4, scoped, tag = 'scoped memory for squeeze.1']
    #allocation2 [shape = 'u8[8192]{0}', space=vmem, size = 0x2000, scoped, tag = 'scoped mem for output reshape']
    %2 = vsyncpa [#allocation1], 0
    %4 = vsyncadd [#allocation1], 0
    %s6 = sshll.u32 %s0, 4
    %s7 = int_to_ptr.hbm [resolvable:$true] %s6
    %s8 = sshll.u32 [#allocation0], 4
    %s9 = int_to_ptr.vmem [resolvable:$true] %s8
    %11 = dma.hbm_to_vmem [thread:$0]  %s7, 512, %s9, [#allocation1]
    %13 = dma.done [#allocation1], 512
    %v14 = vld [vmem:[#allocation0] ss:$8 sm:$0xf]
    %vm15 = vcmask 130048
    %16 = vst.msk [vmem:[#allocation2] sm:$0x3] %vm15, %v14
    %s17 = scalar_lea.vmem [#allocation2], 6
    %18 = vst.msk [vmem:[%s17] sm:$0xc] %vm15, %v14
    %s19 = scalar_lea.vmem [#allocation0], 7
    %v20 = vld [vmem:[%s19] ss:$8 sm:$0xf]
    %21 = vrot.lane.b32.xlu0 %v20, 112
    %v22 = vpop.permute.xlu0 %21
    %vm23 = vcmask 1048448
    %24 = vst.msk [vmem:[#allocation2] sm:$0x3] %vm23, %v22
    %s25 = scalar_lea.vmem [#allocation2], 6
    %26 = vst.msk [vmem:[%s25] sm:$0xc] %vm23, %v22
    %s27 = scalar_lea.vmem [#allocation0], 6
    %v28 = vld [vmem:[%s27] ss:$8 sm:$0xf]
    %29 = vrot.lane.b32.xlu0 %v28, 96
    %v30 = vpop.permute.xlu0 %29
    %vm31 = vcmask 917248
    %32 = vst.msk [vmem:[#allocation2] sm:$0x3] %vm31, %v30
    %s33 = scalar_lea.vmem [#allocation2], 6
    %34 = vst.msk [vmem:[%s33] sm:$0xc] %vm31, %v30
    %s35 = scalar_lea.vmem [#allocation0], 5
    %v36 = vld [vmem:[%s35] ss:$8 sm:$0xf]
    %37 = vrot.lane.b32.xlu0 %v36, 80
    %v38 = vpop.permute.xlu0 %37
    %vm39 = vcmask 786048
    %40 = vst.msk [vmem:[#allocation2] sm:$0x3] %vm39, %v38
    %s41 = scalar_lea.vmem [#allocation2], 6
    %42 = vst.msk [vmem:[%s41] sm:$0xc] %vm39, %v38
    %s43 = scalar_lea.vmem [#allocation0], 4
    %v44 = vld [vmem:[%s43] ss:$8 sm:$0xf]
    %45 = vrot.lane.b32.xlu0 %v44, 64
    %v46 = vpop.permute.xlu0 %45
    %vm47 = vcmask 654848
    %48 = vst.msk [vmem:[#allocation2] sm:$0x3] %vm47, %v46
    %s49 = scalar_lea.vmem [#allocation2], 6
    %50 = vst.msk [vmem:[%s49] sm:$0xc] %vm47, %v46
    %s51 = scalar_lea.vmem [#allocation0], 3
    %v52 = vld [vmem:[%s51] ss:$8 sm:$0xf]
    %53 = vrot.lane.b32.xlu0 %v52, 48
    %v54 = vpop.permute.xlu0 %53
    %vm55 = vcmask 523648
    %56 = vst.msk [vmem:[#allocation2] sm:$0x3] %vm55, %v54
    %s57 = scalar_lea.vmem [#allocation2], 6
    %58 = vst.msk [vmem:[%s57] sm:$0xc] %vm55, %v54
    %s59 = scalar_lea.vmem [#allocation0], 2
    %v60 = vld [vmem:[%s59] ss:$8 sm:$0xf]
    %61 = vrot.lane.b32.xlu0 %v60, 32
    %v62 = vpop.permute.xlu0 %61
    %vm63 = vcmask 392448
    %64 = vst.msk [vmem:[#allocation2] sm:$0x3] %vm63, %v62
    %s65 = scalar_lea.vmem [#allocation2], 6
    %66 = vst.msk [vmem:[%s65] sm:$0xc] %vm63, %v62
    %s67 = scalar_lea.vmem [#allocation0], 1
    %v68 = vld [vmem:[%s67] ss:$8 sm:$0xf]
    %69 = vrot.lane.b32.xlu0 %v68, 16
    %v70 = vpop.permute.xlu0 %69
    %vm71 = vcmask 261248
    %72 = vst.msk [vmem:[#allocation2] sm:$0x3] %vm71, %v70
    %s73 = scalar_lea.vmem [#allocation2], 6
    %74 = vst.msk [vmem:[%s73] sm:$0xc] %vm71, %v70
    %s76 = ssub.s32 4, 1
    %v77 = vld [vmem:[#allocation2] sm:%s76]
    %s79 = ssub.s32 4, 1
    %80 = vst [vmem:[%s1] sm:%s79] %v77
    %s81 = scalar_lea.vmem [#allocation2], 8
    %v82 = vld [vmem:[%s81] sm:%s76]
    %s84 = ssub.s32 4, 1
    %s85 = scalar_lea.vmem %s1, 2
    %86 = vst [vmem:[%s85] sm:%s84] %v82
    %87 = vsyncpa [#allocation1], 1

// kernel: cross_entropy_loss.1
$region0: #{cross_entropy_loss.1}
  #allocation0 [shape = 'u32[]', space=smem, size = 0x4, offset = 0x4, fixed_abs, tag = 'smem constant byte address 0x4 - core index']
  #allocation1 [shape = 'u32[72,128]{1,0:T(1,128)}', space=vmem, size = 0x9000, scoped, tag = 'internal scratch']
  %s0 = inlined_call_operand.vmem [shape: f32[2,2,2,128], index: 0, kind: input, shape index: {}]
  %s1 = inlined_call_operand.vmem [shape: s32[2,2,128], index: 1, kind: input, shape index: {}]
  %s2 = inlined_call_operand.vmem [shape: f32[2,2,128], index: 2, kind: output, shape index: {0}]
  %s3 = inlined_call_operand.vmem [shape: f32[2,2,128], index: 3, kind: output, shape index: {1}]
  %4 = xla_tuple %s2, %s3
  %s5 = sld [smem:[#allocation0]]
  $region53: #{cross_entropy_loss.1} parent=0
    _
  %s7 = ssub.s32 1, %s5
  %s8 = scalar_select 0, %s7, %s5
  loop: start=0, step=1, limit=4
  $region2: #{cross_entropy_loss.1} parent=0 // loop_pre_header
    _
  $region3: #{cross_entropy_loss.1} parent=0 // loop_header
    %s10 = sphi 0, %s14
    %p11 = scmp.ge.s32.totalorder %s10, 4
    %s17 = sphi 0, %s29
    %s18 = sphi 0, %s25
    %s19 = sphi 0, %s17
    %s20 = sphi 0, %s18
    %s21 = sphi 0, %s19
    %s22 = sphi 0, %s20
    %s34 = sphi 0, %s36
    %s37 = sphi 0, %s34
    %s38 = sphi 0, %s37
    %s54 = sphi 0, %s38
    %s62 = sphi 0, %s64
    %s65 = sphi 0, %s62
    %s66 = sphi 0, %s65
    %s82 = sphi 0, %s66
    %s88 = sphi 0, %s90
    %s91 = sphi 0, %s88
    %s92 = sphi 0, %s91
    %s108 = sphi 0, %s92
    %s114 = sphi 0, %s116
    %s117 = sphi 0, %s114
    %s118 = sphi 0, %s117
    %s134 = sphi 0, %s118
  $region4: #{cross_entropy_loss.1} parent=0 // loop_header_branch
    %13 = sbr.rel (%p11) target = $region8
  $region5: #{cross_entropy_loss.1} parent=0 // loop_body
    %s15 = ssub.s32 %s10, 1
    %s16 = ssub.s32 %s10, 2
    %s23 = sadd.s32 1, %s18
    %p24 = scmp.ge.s32.totalorder %s23, 1
    %s25 = scalar_select %p24, 0, %s23
    %s26 = sadd.s32 1, %s17
    %s27 = scalar_select %p24, %s26, %s17
    %p28 = scmp.ge.s32.totalorder %s27, 2
    %s29 = scalar_select %p28, 0, %s27
    %s30 = ssub.s32 %s17, %s29
    %s31 = ssub.s32 %s18, %s25
    %s32 = sor.u32 %s30, %s31
    %p33 = scmp.eq.s32.totalorder %s32, 0
    %s35 = sadd.s32 %s34, 1
    %s36 = scalar_select %p33, %s34, %s35
    %p39 = pneg %p33
    %p40 = scmp.eq.s32.totalorder %s10, 1
    %p41 = por %p39, %p40
    %p42 = scmp.ne.s32.totalorder %s34, %s37
    %p43 = scmp.eq.s32.totalorder %s10, 0
    %p44 = por %p42, %p43
    %p45 = scmp.ne.s32.totalorder %s34, %s37
    %p46 = scmp.eq.s32.totalorder %s15, 1
    %p47 = por %p45, %p46
    %p48 = scmp.ne.s32.totalorder %s37, %s38
    %p49 = scmp.eq.s32.totalorder %s15, 0
    %p50 = por %p48, %p49
    %p51 = scmp.ne.s32.totalorder %s37, %s38
    %p52 = scmp.eq.s32.totalorder %s16, 1
    %p53 = por %p51, %p52
    %p55 = scmp.ne.s32.totalorder %s38, %s54
    %p56 = scmp.eq.s32.totalorder %s16, 0
    %p57 = por %p55, %p56
    %s58 = ssub.s32 %s17, %s29
    %s59 = ssub.s32 %s18, %s25
    %s60 = sor.u32 %s58, %s59
    %p61 = scmp.eq.s32.totalorder %s60, 0
    %s63 = sadd.s32 %s62, 1
    %s64 = scalar_select %p61, %s62, %s63
    %p67 = pneg %p61
    %p68 = scmp.eq.s32.totalorder %s10, 1
    %p69 = por %p67, %p68
    %p70 = scmp.ne.s32.totalorder %s62, %s65
    %p71 = scmp.eq.s32.totalorder %s10, 0
    %p72 = por %p70, %p71
    %p73 = scmp.ne.s32.totalorder %s62, %s65
    %p74 = scmp.eq.s32.totalorder %s15, 1
    %p75 = por %p73, %p74
    %p76 = scmp.ne.s32.totalorder %s65, %s66
    %p77 = scmp.eq.s32.totalorder %s15, 0
    %p78 = por %p76, %p77
    %p79 = scmp.ne.s32.totalorder %s65, %s66
    %p80 = scmp.eq.s32.totalorder %s16, 1
    %p81 = por %p79, %p80
    %p83 = scmp.ne.s32.totalorder %s66, %s82
    %p84 = scmp.eq.s32.totalorder %s16, 0
    %p85 = por %p83, %p84
    %s86 = ssub.s32 %s17, %s29
    %p87 = scmp.eq.s32.totalorder %s86, 0
    %s89 = sadd.s32 %s88, 1
    %s90 = scalar_select %p87, %s88, %s89
    %p93 = pneg %p87
    %p94 = scmp.eq.s32.totalorder %s10, 1
    %p95 = por %p93, %p94
    %p96 = scmp.ne.s32.totalorder %s88, %s91
    %p97 = scmp.eq.s32.totalorder %s10, 0
    %p98 = por %p96, %p97
    %p99 = scmp.ne.s32.totalorder %s88, %s91
    %p100 = scmp.eq.s32.totalorder %s15, 1
    %p101 = por %p99, %p100
    %p102 = scmp.ne.s32.totalorder %s91, %s92
    %p103 = scmp.eq.s32.totalorder %s15, 0
    %p104 = por %p102, %p103
    %p105 = scmp.ne.s32.totalorder %s91, %s92
    %p106 = scmp.eq.s32.totalorder %s16, 1
    %p107 = por %p105, %p106
    %p109 = scmp.ne.s32.totalorder %s92, %s108
    %p110 = scmp.eq.s32.totalorder %s16, 0
    %p111 = por %p109, %p110
    %s112 = ssub.s32 %s17, %s29
    %p113 = scmp.eq.s32.totalorder %s112, 0
    %s115 = sadd.s32 %s114, 1
    %s116 = scalar_select %p113, %s114, %s115
    %p119 = pneg %p113
    %p120 = scmp.eq.s32.totalorder %s10, 1
    %p121 = por %p119, %p120
    %p122 = scmp.ne.s32.totalorder %s114, %s117
    %p123 = scmp.eq.s32.totalorder %s10, 0
    %p124 = por %p122, %p123
    %p125 = scmp.ne.s32.totalorder %s114, %s117
    %p126 = scmp.eq.s32.totalorder %s15, 1
    %p127 = por %p125, %p126
    %p128 = scmp.ne.s32.totalorder %s117, %s118
    %p129 = scmp.eq.s32.totalorder %s15, 0
    %p130 = por %p128, %p129
    %p131 = scmp.ne.s32.totalorder %s117, %s118
    %p132 = scmp.eq.s32.totalorder %s16, 1
    %p133 = por %p131, %p132
    %p135 = scmp.ne.s32.totalorder %s118, %s134
    %p136 = scmp.eq.s32.totalorder %s16, 0
    %p137 = por %p135, %p136
    %p138 = scmp.le.s32.totalorder 1, %s10
    %p139 = scmp.lt.s32.totalorder %s10, 3
    %p140 = pnand %p138, %p139
    %p141 = pneg %p140
    // Predicated region
    $region9: #{cross_entropy_loss.1} parent=5 // pred_check
      _
    $region10: #{cross_entropy_loss.1} parent=5 // pred_check_branch
      %143 = sbr.rel (%p140) target = $region12
    $region11: #{cross_entropy_loss.1} parent=5 // pred_region
      %s144 = ssub.s32 %s10, 1
    $region12: #{cross_entropy_loss.1} parent=5 // pred_fallthru
      _
    %p145 = scmp.lt.s32.totalorder %s10, 2
    // Predicated region
    $region13: #{cross_entropy_loss.1} parent=5 // pred_check
      %p146 = pneg %p145
    $region14: #{cross_entropy_loss.1} parent=5 // pred_check_branch
      %148 = sbr.rel (%p146) target = $region16
    $region15: #{cross_entropy_loss.1} parent=5 // pred_region
      // Predicated region
      $region17: #{cross_entropy_loss.1} parent=15 // pred_check
        %p149 = pneg %p44
      $region18: #{cross_entropy_loss.1} parent=15 // pred_check_branch
        %151 = sbr.rel (%p149) target = $region20
      $region19: #{cross_entropy_loss.1} parent=15 // pred_region
        %p152 = scmp.lt.s32.totalorder %s17, 1
        %s153 = scalar_select %p152, %s17, 1
        %p154 = scmp.lt.s32.totalorder %s18, 0
        %s155 = scalar_select %p154, %s18, 0
        %s156 = smul.addr %s153, 2
        %s157 = sadd.s32 %s155, %s156
        %s158 = smul.addr %s157, 2
        %s159 = scalar_lea.vmem %s0, %s158
      $region20: #{cross_entropy_loss.1} parent=15 // pred_fallthru
        _
      // Predicated region
      $region21: #{cross_entropy_loss.1} parent=15 // pred_check
        %p160 = pneg %p72
      $region22: #{cross_entropy_loss.1} parent=15 // pred_check_branch
        %162 = sbr.rel (%p160) target = $region24
      $region23: #{cross_entropy_loss.1} parent=15 // pred_region
        %p163 = scmp.lt.s32.totalorder %s17, 1
        %s164 = scalar_select %p163, %s17, 1
        %p165 = scmp.lt.s32.totalorder %s18, 0
        %s166 = scalar_select %p165, %s18, 0
        %s167 = sadd.s32 %s166, %s164
        %s168 = smul.addr %s167, 2
        %s169 = scalar_lea.vmem %s1, %s168
      $region24: #{cross_entropy_loss.1} parent=15 // pred_fallthru
        _
    $region16: #{cross_entropy_loss.1} parent=5 // pred_fallthru
      _
    %p170 = scmp.le.s32.totalorder 1, %s10
    %p171 = scmp.lt.s32.totalorder %s10, 3
    %p172 = pnand %p170, %p171
    %p173 = pneg %p172
    // Predicated region
    $region25: #{cross_entropy_loss.1} parent=5 // pred_check
      _
    $region26: #{cross_entropy_loss.1} parent=5 // pred_check_branch
      %175 = sbr.rel (%p172) target = $region28
    $region27: #{cross_entropy_loss.1} parent=5 // pred_region
      %s176 = ssub.s32 %s10, 1
      %p177 = scmp.lt.s32.totalorder %s19, 1
      %s178 = scalar_select %p177, %s19, 1
      %p179 = scmp.lt.s32.totalorder %s20, 0
      %s180 = scalar_select %p179, %s20, 0
      %s181 = smul.addr %s178, 2
      %s182 = sadd.s32 %s180, %s181
      %s183 = smul.addr %s182, 2
      %s184 = scalar_lea.vmem %s0, %s183
      %p185 = pneg %p50
      %p186 = pneg %p47
      %p187 = scmp.lt.s32.totalorder %s19, 1
      %s188 = scalar_select %p187, %s19, 1
      %p189 = scmp.lt.s32.totalorder %s20, 0
      %s190 = scalar_select %p189, %s20, 0
      %s191 = sadd.s32 %s190, %s188
      %s192 = smul.addr %s191, 2
      %s193 = scalar_lea.vmem %s1, %s192
      %p194 = pneg %p78
      %p195 = pneg %p75
      %p196 = pneg %p104
      %p197 = pneg %p101
      %p198 = scmp.lt.s32.totalorder %s19, 1
      %s199 = scalar_select %p198, %s19, 1
      %s200 = smul.addr %s199, 2
      %s201 = scalar_lea.vmem %s2, %s200
      %p202 = pneg %p130
      %p203 = pneg %p127
      %p204 = scmp.lt.s32.totalorder %s19, 1
      %s205 = scalar_select %p204, %s19, 1
      %s206 = smul.addr %s205, 2
      %s207 = scalar_lea.vmem %s3, %s206
      %p208 = scmp.lt.s32.totalorder %s19, 1
      %s209 = scalar_select %p208, %s19, 1
      %p210 = scmp.lt.s32.totalorder %s20, 0
      %s211 = scalar_select %p210, %s20, 0
      %s212 = smul.addr %s209, 2
      %s213 = sadd.s32 %s211, %s212
      %s214 = smul.addr %s213, 2
      %s215 = scalar_lea.vmem %s0, %s214
      %p216 = scmp.lt.s32.totalorder %s19, 1
      %s217 = scalar_select %p216, %s19, 1
      %p218 = scmp.lt.s32.totalorder %s20, 0
      %s219 = scalar_select %p218, %s20, 0
      %s220 = sadd.s32 %s219, %s217
      %s221 = smul.addr %s220, 2
      %s222 = scalar_lea.vmem %s1, %s221
      %p223 = scmp.lt.s32.totalorder %s19, 1
      %s224 = scalar_select %p223, %s19, 1
      %s225 = smul.addr %s224, 2
      %s226 = scalar_lea.vmem %s2, %s225
      %p227 = scmp.lt.s32.totalorder %s19, 1
      %s228 = scalar_select %p227, %s19, 1
      %s229 = smul.addr %s228, 2
      %s230 = scalar_lea.vmem %s3, %s229
      %p231 = scmp.eq.s32.totalorder %s20, 0
      // Predicated region
      $region29: #{cross_entropy_loss.1} parent=27 // pred_check
        %p232 = pneg %p231
      $region30: #{cross_entropy_loss.1} parent=27 // pred_check_branch
        %234 = sbr.rel (%p232) target = $region32
      $region31: #{cross_entropy_loss.1} parent=27 // pred_region
        %235 = vst [vmem:[%s226] sm:$0x3] 0.0
        %236 = vst [vmem:[%s230] sm:$0x3] 0.0
      $region32: #{cross_entropy_loss.1} parent=27 // pred_fallthru
        _
      %v237 = vld [vmem:[%s222] sm:$0x3]
      %v238 = vld [vmem:[%s215] sm:$0x3]
      %s239 = scalar_lea.vmem %s215, 2
      %v240 = vld [vmem:[%s239] sm:$0x3]
      %v241 = vmax.f32 %v238, %v240
      %v242 = vsub.f32 %v238, %v241
      %v243 = vmul.f32 %v242, 1.442695
      %v244 = vpow.pop %v243
      %v245 = vadd.f32 %v244, 0.0
      %vm246 = vcmp.eq.s32.totalorder %v237, 0
      %v247 = vsel %vm246, %v238, 0.0
      %v248 = vsel %vm246, 1.0, 0.0
      %v249 = vsub.f32 %v240, %v241
      %v250 = vmul.f32 %v249, 1.442695
      %v251 = vpow.pop %v250
      %v252 = vadd.f32 %v245, %v251
      %vm253 = vcmp.eq.s32.totalorder %v237, 1
      %v254 = vsel %vm253, %v240, %v247
      %v255 = vsel %vm253, 2.0, %v248
      %v256 = vlog2.pop %v252
      %v257 = vmul.f32 %v256, 0.6931472
      %v258 = vadd.f32 %v241, %v257
      %v259 = vsub.f32 %v258, %v254
      %v260 = vmul.f32 %v255, %v259
      %v261 = vld [vmem:[%s226] sm:$0x3]
      %v262 = vadd.f32 %v261, %v260
      %263 = vst [vmem:[%s226] sm:$0x3] %v262
      %v264 = vld [vmem:[%s230] sm:$0x3]
      %v265 = vadd.f32 %v264, %v255
      %266 = vst [vmem:[%s230] sm:$0x3] %v265
      %p267 = scmp.lt.s32.totalorder %s19, 1
      %s268 = scalar_select %p267, %s19, 1
      %s269 = smul.addr %s268, 2
      %s270 = scalar_lea.vmem %s2, %s269
      %p271 = scmp.lt.s32.totalorder %s19, 1
      %s272 = scalar_select %p271, %s19, 1
      %s273 = smul.addr %s272, 2
      %s274 = scalar_lea.vmem %s3, %s273
      // Predicated region
      $region33: #{cross_entropy_loss.1} parent=27 // pred_check
        %p275 = pneg %p101
      $region34: #{cross_entropy_loss.1} parent=27 // pred_check_branch
        %277 = sbr.rel (%p275) target = $region36
      $region35: #{cross_entropy_loss.1} parent=27 // pred_region
        _
      $region36: #{cross_entropy_loss.1} parent=27 // pred_fallthru
        _
      // Predicated region
      $region37: #{cross_entropy_loss.1} parent=27 // pred_check
        %p278 = pneg %p127
      $region38: #{cross_entropy_loss.1} parent=27 // pred_check_branch
        %280 = sbr.rel (%p278) target = $region40
      $region39: #{cross_entropy_loss.1} parent=27 // pred_region
        _
      $region40: #{cross_entropy_loss.1} parent=27 // pred_fallthru
        _
    $region28: #{cross_entropy_loss.1} parent=5 // pred_fallthru
      _
    %p281 = scmp.le.s32.totalorder 2, %s10
    // Predicated region
    $region41: #{cross_entropy_loss.1} parent=5 // pred_check
      %p282 = pneg %p281
    $region42: #{cross_entropy_loss.1} parent=5 // pred_check_branch
      %284 = sbr.rel (%p282) target = $region44
    $region43: #{cross_entropy_loss.1} parent=5 // pred_region
      %s285 = ssub.s32 %s10, 2
      // Predicated region
      $region45: #{cross_entropy_loss.1} parent=43 // pred_check
        %p286 = pneg %p107
      $region46: #{cross_entropy_loss.1} parent=43 // pred_check_branch
        %288 = sbr.rel (%p286) target = $region48
      $region47: #{cross_entropy_loss.1} parent=43 // pred_region
        %p289 = scmp.lt.s32.totalorder %s21, 1
        %s290 = scalar_select %p289, %s21, 1
        %s291 = smul.addr %s290, 2
        %s292 = scalar_lea.vmem %s2, %s291
      $region48: #{cross_entropy_loss.1} parent=43 // pred_fallthru
        _
      // Predicated region
      $region49: #{cross_entropy_loss.1} parent=43 // pred_check
        %p293 = pneg %p133
      $region50: #{cross_entropy_loss.1} parent=43 // pred_check_branch
        %295 = sbr.rel (%p293) target = $region52
      $region51: #{cross_entropy_loss.1} parent=43 // pred_region
        %p296 = scmp.lt.s32.totalorder %s21, 1
        %s297 = scalar_select %p296, %s21, 1
        %s298 = smul.addr %s297, 2
        %s299 = scalar_lea.vmem %s3, %s298
      $region52: #{cross_entropy_loss.1} parent=43 // pred_fallthru
        _
    $region44: #{cross_entropy_loss.1} parent=5 // pred_fallthru
      _
  $region6: #{cross_entropy_loss.1} parent=0 // loop_footer
    %s14 = sadd.s32 1, %s10
  $region7: #{cross_entropy_loss.1} parent=0 // loop_footer_branch
    %9 = sbr.rel target = $region3
  $region8: #{cross_entropy_loss.1} parent=0 // loop_exit
    _

</llo_original>
